<compile_context>
chip_gen: v6e
topology: v6e:2x2x1
jax: 0.10.0
libtpu: 0.0.40
codegen_flags: <defaults>
</compile_context>

<pallas_src>
import jax
import jax.numpy as jnp
from jax.experimental import pallas as pl
from jax.experimental.pallas import tpu as pltpu


def _qmlp_kernel(xT_ref, w1t_ref, b1_ref, w2t_ref, b2_ref, w3t_ref, b3_ref, o_ref):
    # Activations are (features, tile_b): batch on the lane axis everywhere.
    # Layer 1: fused-concat dense dot (f32 accumulation) + bias + ReLU.
    h = jnp.dot(w1t_ref[...], xT_ref[...], preferred_element_type=jnp.float32)
    h = jnp.maximum(h + b1_ref[...], 0.0)                       # (h1, tile_b)
    # Layer 2: Linear + ReLU on the MXU.
    h = jnp.dot(w2t_ref[...], h, preferred_element_type=jnp.float32)
    h = jnp.maximum(h + b2_ref[...], 0.0)                       # (h2, tile_b)
    # Output layer (out_features == 1): (1, h2) @ (h2, tile_b) -> lane-dense (1, tile_b).
    q = jnp.dot(w3t_ref[...], h, preferred_element_type=jnp.float32)
    o_ref[...] = (q + b3_ref[...]).astype(o_ref.dtype)


def _round_up(x, m):
    return ((x + m - 1) // m) * m


def _cdiv(a, b):
    return (a + b - 1) // b


def mlp_q_function(obs_lin, dgoal, act, params, *, tile_b_max=2048):
    """Fused MLP Q-function forward. Returns q values of shape [B]."""
    w1, b1, w2, b2, w3, b3 = params
    B = obs_lin.shape[0]
    in_dim, h1 = w1.shape
    h2 = w2.shape[1]

    # torch.cat([obs, goal, act], -1) once in the wrapper (tiny, ~76 B/row) so the
    # kernel does one dense K=in_dim dot instead of three narrow ones.
    x = jnp.concatenate([obs_lin, dgoal, act], axis=-1)          # (B, in_dim)

    # Adaptive tiling: minimize grid steps, keep the lane (batch) block a multiple of
    # 128, and give both v7x TensorCores work for reasonably sized batches.
    min_steps = 2 if B >= 256 else 1
    steps = max(min_steps, _cdiv(B, max(tile_b_max, 128)))
    tile_b = _round_up(_cdiv(B, steps), 128)
    b_pad = steps * tile_b

    if b_pad != B:
        x = jnp.pad(x, ((0, b_pad - B), (0, 0)))
    xT = x.T                                                     # (in_dim, b_pad)

    # Transposed weights / column biases for the (features, batch) formulation.
    w1t = w1.T                         # (h1, in_dim)
    w2t = w2.T                         # (h2, h1)
    w3t = w3.T                         # (1, h2)
    b1c = b1.reshape(h1, 1)
    b2c = b2.reshape(h2, 1)
    b3c = b3.reshape(1, 1)

    def resident(shape):
        # Same block every grid step -> stays VMEM-resident, no refetch.
        return pl.BlockSpec(shape, lambda i: (0, 0))

    q = pl.pallas_call(
        _qmlp_kernel,
        out_shape=jax.ShapeDtypeStruct((1, b_pad), jnp.float32),
        grid=(steps,),
        in_specs=[
            pl.BlockSpec((in_dim, tile_b), lambda i: (0, i)),    # activation tile
            resident((h1, in_dim)),                              # W1^T
            resident((h1, 1)),                                   # b1 (column)
            resident((h2, h1)),                                  # W2^T
            resident((h2, 1)),                                   # b2 (column)
            resident((1, h2)),                                   # W3^T (row)
            resident((1, 1)),                                    # b3
        ],
        out_specs=pl.BlockSpec((1, tile_b), lambda i: (0, i)),   # lane-dense output
        compiler_params=pltpu.CompilerParams(
            dimension_semantics=("parallel",)),
    )(xT, w1t, b1c, w2t, b2c, w3t, b3c)

    # torch.squeeze(q, -1) + drop batch padding.
    return q[0, :B]


def init_params(key, in_dim, hidden_sizes):
    """Deterministic PyTorch-Linear-style init: U(-1/sqrt(fan_in), 1/sqrt(fan_in))."""
    sizes = [in_dim] + list(hidden_sizes) + [1]
    params = []
    for i in range(len(sizes) - 1):
        fan_in, fan_out = sizes[i], sizes[i + 1]
        key, kw, kb = jax.random.split(key, 3)
        bound = 1.0 / jnp.sqrt(jnp.float32(fan_in))
        w = jax.random.uniform(kw, (fan_in, fan_out), jnp.float32, -bound, bound)
        b = jax.random.uniform(kb, (1, fan_out), jnp.float32, -bound, bound)
        params.extend([w, b])
    return tuple(params)


def reference_forward(obs_lin, dgoal, act, params):
    """Pure-JAX reference matching the PyTorch module."""
    w1, b1, w2, b2, w3, b3 = params
    x = jnp.concatenate([obs_lin, dgoal, act], axis=-1)
    h = jnp.maximum(x @ w1 + b1, 0.0)
    h = jnp.maximum(h @ w2 + b2, 0.0)
    q = h @ w3 + b3
    return q[:, 0]


if __name__ == "__main__":
    # Small shapes consistent with a HER-style gym env.
    B = 8          # batch
    obs_dim = 12   # obs_space.spaces['observation'].shape[0]
    dgoal_dim = 3  # obs_space.spaces['desired_goal'].shape[0]
    act_dim = 4
    hidden_sizes = (32, 32)  # activation = ReLU

    key = jax.random.PRNGKey(0)
    key, k_obs, k_goal, k_act, k_params = jax.random.split(key, 5)

    obs_lin = jax.random.normal(k_obs, (B, obs_dim), jnp.float32)
    dgoal = jax.random.normal(k_goal, (B, dgoal_dim), jnp.float32)
    act = jax.random.normal(k_act, (B, act_dim), jnp.float32)

    params = init_params(k_params, obs_dim + dgoal_dim + act_dim, hidden_sizes)

    q_kernel = jax.block_until_ready(mlp_q_function(obs_lin, dgoal, act, params))
    q_ref = jax.block_until_ready(reference_forward(obs_lin, dgoal, act, params))

    assert q_kernel.shape == (B,), q_kernel.shape
    assert jnp.allclose(q_kernel, q_ref, atol=1e-5, rtol=1e-5), (q_kernel, q_ref)

    # Second check: multi-step batch grid + padding path (grid=(2,), tile_b=128).
    B2 = 100
    key, k_obs2, k_goal2, k_act2 = jax.random.split(key, 4)
    obs2 = jax.random.normal(k_obs2, (B2, obs_dim), jnp.float32)
    goal2 = jax.random.normal(k_goal2, (B2, dgoal_dim), jnp.float32)
    act2 = jax.random.normal(k_act2, (B2, act_dim), jnp.float32)
    q2 = jax.block_until_ready(mlp_q_function(obs2, goal2, act2, params, tile_b_max=64))
    q2_ref = jax.block_until_ready(reference_forward(obs2, goal2, act2, params))
    assert q2.shape == (B2,), q2.shape
    assert jnp.allclose(q2, q2_ref, atol=1e-5, rtol=1e-5)

    # Third check: large batch -> forced >= 2 grid steps (megacore path on v7x).
    B3 = 600
    key, k_obs3, k_goal3, k_act3 = jax.random.split(key, 4)
    obs3 = jax.random.normal(k_obs3, (B3, obs_dim), jnp.float32)
    goal3 = jax.random.normal(k_goal3, (B3, dgoal_dim), jnp.float32)
    act3 = jax.random.normal(k_act3, (B3, act_dim), jnp.float32)
    q3 = jax.block_until_ready(mlp_q_function(obs3, goal3, act3, params))
    q3_ref = jax.block_until_ready(reference_forward(obs3, goal3, act3, params))
    assert q3.shape == (B3,), q3.shape
    assert jnp.allclose(q3, q3_ref, atol=1e-5, rtol=1e-5)

    print("KERNEL_OK")
</pallas_src>

<mosaic_0001>
module attributes {stable_mosaic.version = 11 : i64} {
  func.func @_qmlp_kernel(%arg0: i32, %arg1: memref<19x128xf32, #tpu.memory_space<vmem>>, %arg2: memref<32x19xf32, #tpu.memory_space<vmem>>, %arg3: memref<32x1xf32, #tpu.memory_space<vmem>>, %arg4: memref<32x32xf32, #tpu.memory_space<vmem>>, %arg5: memref<32x1xf32, #tpu.memory_space<vmem>>, %arg6: memref<1x32xf32, #tpu.memory_space<vmem>>, %arg7: memref<1x1xf32, #tpu.memory_space<vmem>>, %arg8: memref<1x128xf32, #tpu.memory_space<vmem>>) attributes {dimension_semantics = [#tpu.dimension_semantics<parallel>], iteration_bounds = array<i64: 1>, scalar_prefetch = 0 : i64, scratch_operands = 0 : i64, tpu.core_type = #tpu.core_type<tc>, window_params = [{transform_indices = @transform_0, window_bounds = array<i64: 19, 128>}, {pipeline_mode = #tpu.pipeline_mode<synchronous>, transform_indices = @transform_1, window_bounds = array<i64: 32, 19>}, {pipeline_mode = #tpu.pipeline_mode<synchronous>, transform_indices = @transform_2, window_bounds = array<i64: 32, 1>}, {pipeline_mode = #tpu.pipeline_mode<synchronous>, transform_indices = @transform_3, window_bounds = array<i64: 32, 32>}, {pipeline_mode = #tpu.pipeline_mode<synchronous>, transform_indices = @transform_4, window_bounds = array<i64: 32, 1>}, {pipeline_mode = #tpu.pipeline_mode<synchronous>, transform_indices = @transform_5, window_bounds = array<i64: 1, 32>}, {pipeline_mode = #tpu.pipeline_mode<synchronous>, transform_indices = @transform_6, window_bounds = array<i64: 1, 1>}, {transform_indices = @transform_7, window_bounds = array<i64: 1, 128>}]} {
    %c0 = arith.constant 0 : index
    %c0_0 = arith.constant 0 : index
    %0 = vector.load %arg2[%c0, %c0_0] : memref<32x19xf32, #tpu.memory_space<vmem>>, vector<32x19xf32>
    %c0_1 = arith.constant 0 : index
    %c0_2 = arith.constant 0 : index
    %1 = vector.load %arg1[%c0_1, %c0_2] : memref<19x128xf32, #tpu.memory_space<vmem>>, vector<19x128xf32>
    %cst = arith.constant dense<0.000000e+00> : vector<32x128xf32>
    %2 = tpu.matmul %0, %1, %cst {dimension_numbers = #tpu.dot_dimension_numbers<[1], [0], [0], [1], [0, 0, 1, 1], [], []>} : vector<32x19xf32>, vector<19x128xf32>, vector<32x128xf32> -> vector<32x128xf32>
    %c0_3 = arith.constant 0 : index
    %c0_4 = arith.constant 0 : index
    %3 = vector.load %arg3[%c0_3, %c0_4] : memref<32x1xf32, #tpu.memory_space<vmem>>, vector<32x1xf32>
    %4 = vector.broadcast %3 : vector<32x1xf32> to vector<32x128xf32>
    %5 = arith.addf %2, %4 : vector<32x128xf32>
    %cst_5 = arith.constant 0.000000e+00 : f32
    %6 = vector.broadcast %cst_5 : f32 to vector<32x128xf32>
    %7 = arith.maximumf %5, %6 : vector<32x128xf32>
    %c0_6 = arith.constant 0 : index
    %c0_7 = arith.constant 0 : index
    %8 = vector.load %arg4[%c0_6, %c0_7] : memref<32x32xf32, #tpu.memory_space<vmem>>, vector<32x32xf32>
    %cst_8 = arith.constant dense<0.000000e+00> : vector<32x128xf32>
    %9 = tpu.matmul %8, %7, %cst_8 {dimension_numbers = #tpu.dot_dimension_numbers<[1], [0], [0], [1], [0, 0, 1, 1], [], []>} : vector<32x32xf32>, vector<32x128xf32>, vector<32x128xf32> -> vector<32x128xf32>
    %c0_9 = arith.constant 0 : index
    %c0_10 = arith.constant 0 : index
    %10 = vector.load %arg5[%c0_9, %c0_10] : memref<32x1xf32, #tpu.memory_space<vmem>>, vector<32x1xf32>
    %11 = vector.broadcast %10 : vector<32x1xf32> to vector<32x128xf32>
    %12 = arith.addf %9, %11 : vector<32x128xf32>
    %cst_11 = arith.constant 0.000000e+00 : f32
    %13 = vector.broadcast %cst_11 : f32 to vector<32x128xf32>
    %14 = arith.maximumf %12, %13 : vector<32x128xf32>
    %c0_12 = arith.constant 0 : index
    %c0_13 = arith.constant 0 : index
    %15 = vector.load %arg6[%c0_12, %c0_13] : memref<1x32xf32, #tpu.memory_space<vmem>>, vector<1x32xf32>
    %cst_14 = arith.constant dense<0.000000e+00> : vector<1x128xf32>
    %16 = tpu.matmul %15, %14, %cst_14 {dimension_numbers = #tpu.dot_dimension_numbers<[1], [0], [0], [1], [0, 0, 1, 1], [], []>} : vector<1x32xf32>, vector<32x128xf32>, vector<1x128xf32> -> vector<1x128xf32>
    %c0_15 = arith.constant 0 : index
    %c0_16 = arith.constant 0 : index
    %17 = vector.load %arg7[%c0_15, %c0_16] : memref<1x1xf32, #tpu.memory_space<vmem>>, vector<1x1xf32>
    %18 = vector.broadcast %17 : vector<1x1xf32> to vector<1x128xf32>
    %19 = arith.addf %16, %18 : vector<1x128xf32>
    %c0_17 = arith.constant 0 : index
    %c0_18 = arith.constant 0 : index
    %20 = vector.load %arg8[%c0_17, %c0_18] : memref<1x128xf32, #tpu.memory_space<vmem>>, vector<1x128xf32>
    tpu.vector_store %arg8[%c0_17, %c0_18], %19 {strides = array<i32>} : memref<1x128xf32, #tpu.memory_space<vmem>>, vector<1x128xf32>,
    return
  }
  func.func @transform_0(%arg0: i32) -> (i32, i32) {
    %c0_i32 = arith.constant 0 : i32
    %c0_i32_0 = arith.constant 0 : i32
    return %c0_i32, %arg0 : i32, i32
  }
  func.func @transform_1(%arg0: i32) -> (i32, i32) {
    %c0_i32 = arith.constant 0 : i32
    %c0_i32_0 = arith.constant 0 : i32
    %c0_i32_1 = arith.constant 0 : i32
    return %c0_i32, %c0_i32_0 : i32, i32
  }
  func.func @transform_2(%arg0: i32) -> (i32, i32) {
    %c0_i32 = arith.constant 0 : i32
    %c0_i32_0 = arith.constant 0 : i32
    %c0_i32_1 = arith.constant 0 : i32
    return %c0_i32, %c0_i32_0 : i32, i32
  }
  func.func @transform_3(%arg0: i32) -> (i32, i32) {
    %c0_i32 = arith.constant 0 : i32
    %c0_i32_0 = arith.constant 0 : i32
    %c0_i32_1 = arith.constant 0 : i32
    return %c0_i32, %c0_i32_0 : i32, i32
  }
  func.func @transform_4(%arg0: i32) -> (i32, i32) {
    %c0_i32 = arith.constant 0 : i32
    %c0_i32_0 = arith.constant 0 : i32
    %c0_i32_1 = arith.constant 0 : i32
    return %c0_i32, %c0_i32_0 : i32, i32
  }
  func.func @transform_5(%arg0: i32) -> (i32, i32) {
    %c0_i32 = arith.constant 0 : i32
    %c0_i32_0 = arith.constant 0 : i32
    %c0_i32_1 = arith.constant 0 : i32
    return %c0_i32, %c0_i32_0 : i32, i32
  }
  func.func @transform_6(%arg0: i32) -> (i32, i32) {
    %c0_i32 = arith.constant 0 : i32
    %c0_i32_0 = arith.constant 0 : i32
    %c0_i32_1 = arith.constant 0 : i32
    return %c0_i32, %c0_i32_0 : i32, i32
  }
  func.func @transform_7(%arg0: i32) -> (i32, i32) {
    %c0_i32 = arith.constant 0 : i32
    %c0_i32_0 = arith.constant 0 : i32
    return %c0_i32, %arg0 : i32, i32
  }
}

</mosaic_0001>

<llo_original>
// kernel: tpu_custom_call.1
$region0: #{tpu_custom_call.1}
  #allocation0 [shape = 'u32[]', space=smem, size = 0x4, offset = 0x4, fixed_abs, tag = 'smem constant byte address 0x4 - core index']
  #allocation1 [shape = 'u32[144,128]{1,0:T(1,128)}', space=vmem, size = 0x12000, scoped, tag = 'internal scratch']
  #allocation2 [shape = 'f32[1,1]{1,0:T(1,128)S(1)}', space=vmem, size = 0x200, scoped, tag = 'scoped memory for tpu_custom_call.1']
  %s0 = inlined_call_operand.vmem [shape: f32[19,128], index: 0, kind: input, shape index: {}]
  %s1 = inlined_call_operand.vmem [shape: f32[32,19], index: 1, kind: input, shape index: {}]
  %s2 = inlined_call_operand.vmem [shape: f32[32,1], index: 2, kind: input, shape index: {}]
  %s3 = inlined_call_operand.vmem [shape: f32[32,32], index: 3, kind: input, shape index: {}]
  %s4 = inlined_call_operand.vmem [shape: f32[32,1], index: 4, kind: input, shape index: {}]
  %s5 = inlined_call_operand.vmem [shape: f32[1,32], index: 5, kind: input, shape index: {}]
  %s6 = inlined_call_operand.<no memory space> [shape: f32[1,1], index: 6, kind: input, shape index: {}]
  %s7 = inlined_call_operand.hbm [shape: f32[1,128], index: 7, kind: output, shape index: {}]
  %s8 = sld [smem:[#allocation0]]
  $region38: #{tpu_custom_call.1} parent=0
    _
  %s10 = ssub.s32 1, %s8
  %s11 = scalar_select 0, %s10, %s8
  %v12 = vstv %s6
  %13 = vst [vmem:[#allocation2] sm:$0x1] %v12
  $region1: #{tpu_custom_call.1} parent=0
    #allocation3 [shape = 'u8[512]{0}', space=vmem, size = 0x400, scoped, tag = 'output window, operand 0, single buffered']
    #allocation4 [shape = 's32[1]{0}', space=sflag, size = 0x4, scoped, tag = 'scoped memory for tpu_custom_call.1']
    %14 = vsyncpa [#allocation4], 0
    // Predicated region
    $region2: #{tpu_custom_call.1} parent=1 // pred_check
      _
    $region3: #{tpu_custom_call.1} parent=1 // pred_check_branch
      %16 = sbr.rel (0) target = $region5
    $region4: #{tpu_custom_call.1} parent=1 // pred_region
      _
    $region5: #{tpu_custom_call.1} parent=1 // pred_fallthru
      _
    // Predicated region
    $region6: #{tpu_custom_call.1} parent=1 // pred_check
      _
    $region7: #{tpu_custom_call.1} parent=1 // pred_check_branch
      %18 = sbr.rel (0) target = $region9
    $region8: #{tpu_custom_call.1} parent=1 // pred_region
      _
    $region9: #{tpu_custom_call.1} parent=1 // pred_fallthru
      _
    // Predicated region
    $region10: #{tpu_custom_call.1} parent=1 // pred_check
      _
    $region11: #{tpu_custom_call.1} parent=1 // pred_check_branch
      %20 = sbr.rel (0) target = $region13
    $region12: #{tpu_custom_call.1} parent=1 // pred_region
      _
    $region13: #{tpu_custom_call.1} parent=1 // pred_fallthru
      _
    // Predicated region
    $region14: #{tpu_custom_call.1} parent=1 // pred_check
      _
    $region15: #{tpu_custom_call.1} parent=1 // pred_check_branch
      %22 = sbr.rel (0) target = $region17
    $region16: #{tpu_custom_call.1} parent=1 // pred_region
      _
    $region17: #{tpu_custom_call.1} parent=1 // pred_fallthru
      _
    // Predicated region
    $region18: #{tpu_custom_call.1} parent=1 // pred_check
      _
    $region19: #{tpu_custom_call.1} parent=1 // pred_check_branch
      %24 = sbr.rel (0) target = $region21
    $region20: #{tpu_custom_call.1} parent=1 // pred_region
      _
    $region21: #{tpu_custom_call.1} parent=1 // pred_fallthru
      _
    // Predicated region
    $region22: #{tpu_custom_call.1} parent=1 // pred_check
      _
    $region23: #{tpu_custom_call.1} parent=1 // pred_check_branch
      %26 = sbr.rel (0) target = $region25
    $region24: #{tpu_custom_call.1} parent=1 // pred_region
      _
    $region25: #{tpu_custom_call.1} parent=1 // pred_fallthru
      _
    // Predicated region
    $region26: #{tpu_custom_call.1} parent=1 // pred_check
      _
    $region27: #{tpu_custom_call.1} parent=1 // pred_check_branch
      %28 = sbr.rel (0) target = $region29
    $region28: #{tpu_custom_call.1} parent=1 // pred_region
      _
    $region29: #{tpu_custom_call.1} parent=1 // pred_fallthru
      _
    %v29 = vld [vmem:[%s1] sm:$0xff]
    %v30 = vld [vmem:[%s1 + $0x8] sm:$0xff]
    %v31 = vld [vmem:[%s1 + $0x10] sm:$0xff]
    %v32 = vld [vmem:[%s1 + $0x18] sm:$0xff]
    %v33 = vld [vmem:[%s0] sm:$0xff]
    %v34 = vld [vmem:[%s0 + $0x8] sm:$0xff]
    %v35 = vld [vmem:[%s0 + $0x10] sm:$0x7]
    %v36 = vld [vmem:[%s2] sm:$0xff]
    %v37 = vld [vmem:[%s2 + $0x8] sm:$0xff]
    %v38 = vld [vmem:[%s2 + $0x10] sm:$0xff]
    %v39 = vld [vmem:[%s2 + $0x18] sm:$0xff]
    %41 = vset.pattern.permute.xlu0 0
    %42 = vperm.xlu0 %41, %v36
    %v43 = vpop.permute.xlu0 %42
    %46 = vset.pattern.permute.xlu0 0
    %47 = vperm.xlu0 %46, %v37
    %v48 = vpop.permute.xlu0 %47
    %51 = vset.pattern.permute.xlu0 0
    %52 = vperm.xlu0 %51, %v38
    %v53 = vpop.permute.xlu0 %52
    %56 = vset.pattern.permute.xlu0 0
    %57 = vperm.xlu0 %56, %v39
    %v58 = vpop.permute.xlu0 %57
    %vm60 = vcmask 154624
    %v62 = vsel %vm60, %v29, 0
    %v65 = vsel %vm60, %v30, 0
    %v68 = vsel %vm60, %v31, 0
    %v71 = vsel %vm60, %v32, 0
    %vm73 = vcmask 1042432
    %v75 = vsel %vm73, %v35, 0
    %77 = vmatprep.subr.mxu0 0.0
    %78 = vmatpush1.msra.mxu0 0.0
    %79 = vmatprep.subr.mxu0 0.0
    %80 = vmatpush1.msra.mxu0 0.0
    %81 = vmatprep.subr.mxu0 0.0
    %82 = vmatpush1.msra.mxu0 0.0
    %83 = vmatprep.subr.mxu0 0.0
    %84 = vmatpush1.msra.mxu0 0.0
    %85 = vmatprep.subr.mxu0 0.0
    %86 = vmatpush1.msra.mxu0 0.0
    %87 = vmatprep.subr.mxu0 0.0
    %88 = vmatpush1.msra.mxu0 0.0
    %89 = vmatprep.subr.mxu0 0.0
    %90 = vmatpush1.msra.mxu0 0.0
    %91 = vmatprep.subr.mxu0 0.0
    %92 = vmatpush1.msra.mxu0 0.0
    %93 = vmatprep.subr.mxu0 0.0
    %94 = vmatpush1.msra.mxu0 0.0
    %95 = vmatprep.subr.mxu0 0.0
    %96 = vmatpush1.msra.mxu0 0.0
    %97 = vmatprep.subr.mxu0 0.0
    %98 = vmatpush1.msra.mxu0 0.0
    %99 = vmatprep.subr.mxu0 0.0
    %100 = vmatpush1.msra.mxu0 0.0
    %101 = vmatprep.subr.mxu0 0.0
    %102 = vmatpush1.msra.mxu0 0.0
    %103 = vmatprep.subr.mxu0 0.0
    %104 = vmatpush1.msra.mxu0 %v75
    %105 = vmatprep.subr.mxu0 0.0
    %106 = vmatpush1.msra.mxu0 %v34
    %107 = vmatprep.subr.mxu0 0.0
    %108 = vmatpush1.msra.mxu0 %v33
    %109 = vmatprep.subr.mxu0 0.0
    %110 = vmatpush2.msra.mxu0 0.0
    %111 = vmatprep.subr.mxu0 0.0
    %112 = vmatpush2.msra.mxu0 0.0
    %113 = vmatprep.subr.mxu0 0.0
    %114 = vmatpush2.msra.mxu0 0.0
    %115 = vmatprep.subr.mxu0 0.0
    %116 = vmatpush2.msra.mxu0 0.0
    %117 = vmatprep.subr.mxu0 0.0
    %118 = vmatpush2.msra.mxu0 0.0
    %119 = vmatprep.subr.mxu0 0.0
    %120 = vmatpush2.msra.mxu0 0.0
    %121 = vmatprep.subr.mxu0 0.0
    %122 = vmatpush2.msra.mxu0 0.0
    %123 = vmatprep.subr.mxu0 0.0
    %124 = vmatpush2.msra.mxu0 0.0
    %125 = vmatprep.subr.mxu0 0.0
    %126 = vmatpush2.msra.mxu0 0.0
    %127 = vmatprep.subr.mxu0 0.0
    %128 = vmatpush2.msra.mxu0 0.0
    %129 = vmatprep.subr.mxu0 0.0
    %130 = vmatpush2.msra.mxu0 0.0
    %131 = vmatprep.subr.mxu0 0.0
    %132 = vmatpush2.msra.mxu0 0.0
    %133 = vmatprep.subr.mxu0 0.0
    %134 = vmatpush2.msra.mxu0 0.0
    %135 = vmatprep.subr.mxu0 0.0
    %136 = vmatpush2.msra.mxu0 0.0
    %137 = vmatprep.subr.mxu0 0.0
    %138 = vmatpush2.msra.mxu0 0.0
    %139 = vmatprep.subr.mxu0 0.0
    %140 = vmatpush2.msra.mxu0 0.0
    %141 = vmatprep.mubr.f32.mxu0 0.0
    %142 = vmatmul.mubr.f32.gmra.mxu0 %v62
    %v143 = vpop.f32.mrf.mxu0
    %v144 = vadd.f32 %v43, %v143
    %v145 = vpop.f32.mrf.mxu0
    %146 = vmatprep.mubr.f32.mxu0 0.0
    %147 = vmatmul.mubr.f32.gmra.mxu0 %v65
    %v148 = vpop.f32.mrf.mxu0
    %v149 = vadd.f32 %v48, %v148
    %v150 = vpop.f32.mrf.mxu0
    %151 = vmatprep.mubr.f32.mxu0 0.0
    %152 = vmatmul.mubr.f32.gmra.mxu0 %v68
    %v153 = vpop.f32.mrf.mxu0
    %v154 = vadd.f32 %v53, %v153
    %v155 = vpop.f32.mrf.mxu0
    %156 = vmatprep.mubr.f32.mxu0 0.0
    %157 = vmatmul.mubr.f32.gmra.mxu0 %v71
    %v158 = vpop.f32.mrf.mxu0
    %v159 = vadd.f32 %v58, %v158
    %v160 = vpop.f32.mrf.mxu0
    %161 = vdwg.mxu0
    %v162 = vmax.f32 %v144, 0.0
    %v163 = vmax.f32 %v149, 0.0
    %v164 = vmax.f32 %v154, 0.0
    %v165 = vmax.f32 %v159, 0.0
    %v166 = vld [vmem:[%s3] sm:$0xff]
    %v167 = vld [vmem:[%s3 + $0x8] sm:$0xff]
    %v168 = vld [vmem:[%s3 + $0x10] sm:$0xff]
    %v169 = vld [vmem:[%s3 + $0x18] sm:$0xff]
    %v170 = vld [vmem:[%s4] sm:$0xff]
    %v171 = vld [vmem:[%s4 + $0x8] sm:$0xff]
    %v172 = vld [vmem:[%s4 + $0x10] sm:$0xff]
    %v173 = vld [vmem:[%s4 + $0x18] sm:$0xff]
    %175 = vset.pattern.permute.xlu0 0
    %176 = vperm.xlu0 %175, %v170
    %v177 = vpop.permute.xlu0 %176
    %180 = vset.pattern.permute.xlu0 0
    %181 = vperm.xlu0 %180, %v171
    %v182 = vpop.permute.xlu0 %181
    %185 = vset.pattern.permute.xlu0 0
    %186 = vperm.xlu0 %185, %v172
    %v187 = vpop.permute.xlu0 %186
    %190 = vset.pattern.permute.xlu0 0
    %191 = vperm.xlu0 %190, %v173
    %v192 = vpop.permute.xlu0 %191
    %vm194 = vcmask 261120
    %v196 = vsel %vm194, %v166, 0
    %v199 = vsel %vm194, %v167, 0
    %v202 = vsel %vm194, %v168, 0
    %v205 = vsel %vm194, %v169, 0
    %207 = vmatprep.subr.mxu0 0.0
    %208 = vmatpush1.msra.mxu0 0.0
    %209 = vmatprep.subr.mxu0 0.0
    %210 = vmatpush1.msra.mxu0 0.0
    %211 = vmatprep.subr.mxu0 0.0
    %212 = vmatpush1.msra.mxu0 0.0
    %213 = vmatprep.subr.mxu0 0.0
    %214 = vmatpush1.msra.mxu0 0.0
    %215 = vmatprep.subr.mxu0 0.0
    %216 = vmatpush1.msra.mxu0 0.0
    %217 = vmatprep.subr.mxu0 0.0
    %218 = vmatpush1.msra.mxu0 0.0
    %219 = vmatprep.subr.mxu0 0.0
    %220 = vmatpush1.msra.mxu0 0.0
    %221 = vmatprep.subr.mxu0 0.0
    %222 = vmatpush1.msra.mxu0 0.0
    %223 = vmatprep.subr.mxu0 0.0
    %224 = vmatpush1.msra.mxu0 0.0
    %225 = vmatprep.subr.mxu0 0.0
    %226 = vmatpush1.msra.mxu0 0.0
    %227 = vmatprep.subr.mxu0 0.0
    %228 = vmatpush1.msra.mxu0 0.0
    %229 = vmatprep.subr.mxu0 0.0
    %230 = vmatpush1.msra.mxu0 0.0
    %231 = vmatprep.subr.mxu0 0.0
    %232 = vmatpush1.msra.mxu0 %v165
    %233 = vmatprep.subr.mxu0 0.0
    %234 = vmatpush1.msra.mxu0 %v164
    %235 = vmatprep.subr.mxu0 0.0
    %236 = vmatpush1.msra.mxu0 %v163
    %237 = vmatprep.subr.mxu0 0.0
    %238 = vmatpush1.msra.mxu0 %v162
    %239 = vmatprep.subr.mxu0 0.0
    %240 = vmatpush2.msra.mxu0 0.0
    %241 = vmatprep.subr.mxu0 0.0
    %242 = vmatpush2.msra.mxu0 0.0
    %243 = vmatprep.subr.mxu0 0.0
    %244 = vmatpush2.msra.mxu0 0.0
    %245 = vmatprep.subr.mxu0 0.0
    %246 = vmatpush2.msra.mxu0 0.0
    %247 = vmatprep.subr.mxu0 0.0
    %248 = vmatpush2.msra.mxu0 0.0
    %249 = vmatprep.subr.mxu0 0.0
    %250 = vmatpush2.msra.mxu0 0.0
    %251 = vmatprep.subr.mxu0 0.0
    %252 = vmatpush2.msra.mxu0 0.0
    %253 = vmatprep.subr.mxu0 0.0
    %254 = vmatpush2.msra.mxu0 0.0
    %255 = vmatprep.subr.mxu0 0.0
    %256 = vmatpush2.msra.mxu0 0.0
    %257 = vmatprep.subr.mxu0 0.0
    %258 = vmatpush2.msra.mxu0 0.0
    %259 = vmatprep.subr.mxu0 0.0
    %260 = vmatpush2.msra.mxu0 0.0
    %261 = vmatprep.subr.mxu0 0.0
    %262 = vmatpush2.msra.mxu0 0.0
    %263 = vmatprep.subr.mxu0 0.0
    %264 = vmatpush2.msra.mxu0 0.0
    %265 = vmatprep.subr.mxu0 0.0
    %266 = vmatpush2.msra.mxu0 0.0
    %267 = vmatprep.subr.mxu0 0.0
    %268 = vmatpush2.msra.mxu0 0.0
    %269 = vmatprep.subr.mxu0 0.0
    %270 = vmatpush2.msra.mxu0 0.0
    %271 = vmatprep.mubr.f32.mxu0 0.0
    %272 = vmatmul.mubr.f32.gmra.mxu0 %v196
    %v273 = vpop.f32.mrf.mxu0
    %v274 = vadd.f32 %v177, %v273
    %v275 = vpop.f32.mrf.mxu0
    %276 = vmatprep.mubr.f32.mxu0 0.0
    %277 = vmatmul.mubr.f32.gmra.mxu0 %v199
    %v278 = vpop.f32.mrf.mxu0
    %v279 = vadd.f32 %v182, %v278
    %v280 = vpop.f32.mrf.mxu0
    %281 = vmatprep.mubr.f32.mxu0 0.0
    %282 = vmatmul.mubr.f32.gmra.mxu0 %v202
    %v283 = vpop.f32.mrf.mxu0
    %v284 = vadd.f32 %v187, %v283
    %v285 = vpop.f32.mrf.mxu0
    %286 = vmatprep.mubr.f32.mxu0 0.0
    %287 = vmatmul.mubr.f32.gmra.mxu0 %v205
    %v288 = vpop.f32.mrf.mxu0
    %v289 = vadd.f32 %v192, %v288
    %v290 = vpop.f32.mrf.mxu0
    %291 = vdwg.mxu0
    %v292 = vmax.f32 %v274, 0.0
    %v293 = vmax.f32 %v279, 0.0
    %v294 = vmax.f32 %v284, 0.0
    %v295 = vmax.f32 %v289, 0.0
    %v296 = vld [vmem:[%s5] sm:$0x1]
    %v297 = vld [vmem:[#allocation2] sm:$0x1]
    %299 = vset.pattern.permute.xlu0 0
    %300 = vperm.xlu0 %299, %v297
    %v301 = vpop.permute.xlu0 %300
    %v303 = vlaneseq
    %v304 = vshrl.u32 %v303, 7
    %v305 = vsub.s32 0, %v304
    %v306 = vrot.slane %v301, %v305
    %v308 = vsel %vm194, %v296, 0
    %310 = vmatprep.subr.mxu0 0.0
    %311 = vmatpush1.msra.mxu0 0.0
    %312 = vmatprep.subr.mxu0 0.0
    %313 = vmatpush1.msra.mxu0 0.0
    %314 = vmatprep.subr.mxu0 0.0
    %315 = vmatpush1.msra.mxu0 0.0
    %316 = vmatprep.subr.mxu0 0.0
    %317 = vmatpush1.msra.mxu0 0.0
    %318 = vmatprep.subr.mxu0 0.0
    %319 = vmatpush1.msra.mxu0 0.0
    %320 = vmatprep.subr.mxu0 0.0
    %321 = vmatpush1.msra.mxu0 0.0
    %322 = vmatprep.subr.mxu0 0.0
    %323 = vmatpush1.msra.mxu0 0.0
    %324 = vmatprep.subr.mxu0 0.0
    %325 = vmatpush1.msra.mxu0 0.0
    %326 = vmatprep.subr.mxu0 0.0
    %327 = vmatpush1.msra.mxu0 0.0
    %328 = vmatprep.subr.mxu0 0.0
    %329 = vmatpush1.msra.mxu0 0.0
    %330 = vmatprep.subr.mxu0 0.0
    %331 = vmatpush1.msra.mxu0 0.0
    %332 = vmatprep.subr.mxu0 0.0
    %333 = vmatpush1.msra.mxu0 0.0
    %334 = vmatprep.subr.mxu0 0.0
    %335 = vmatpush1.msra.mxu0 %v295
    %336 = vmatprep.subr.mxu0 0.0
    %337 = vmatpush1.msra.mxu0 %v294
    %338 = vmatprep.subr.mxu0 0.0
    %339 = vmatpush1.msra.mxu0 %v293
    %340 = vmatprep.subr.mxu0 0.0
    %341 = vmatpush1.msra.mxu0 %v292
    %342 = vmatprep.subr.mxu0 0.0
    %343 = vmatpush2.msra.mxu0 0.0
    %344 = vmatprep.subr.mxu0 0.0
    %345 = vmatpush2.msra.mxu0 0.0
    %346 = vmatprep.subr.mxu0 0.0
    %347 = vmatpush2.msra.mxu0 0.0
    %348 = vmatprep.subr.mxu0 0.0
    %349 = vmatpush2.msra.mxu0 0.0
    %350 = vmatprep.subr.mxu0 0.0
    %351 = vmatpush2.msra.mxu0 0.0
    %352 = vmatprep.subr.mxu0 0.0
    %353 = vmatpush2.msra.mxu0 0.0
    %354 = vmatprep.subr.mxu0 0.0
    %355 = vmatpush2.msra.mxu0 0.0
    %356 = vmatprep.subr.mxu0 0.0
    %357 = vmatpush2.msra.mxu0 0.0
    %358 = vmatprep.subr.mxu0 0.0
    %359 = vmatpush2.msra.mxu0 0.0
    %360 = vmatprep.subr.mxu0 0.0
    %361 = vmatpush2.msra.mxu0 0.0
    %362 = vmatprep.subr.mxu0 0.0
    %363 = vmatpush2.msra.mxu0 0.0
    %364 = vmatprep.subr.mxu0 0.0
    %365 = vmatpush2.msra.mxu0 0.0
    %366 = vmatprep.subr.mxu0 0.0
    %367 = vmatpush2.msra.mxu0 0.0
    %368 = vmatprep.subr.mxu0 0.0
    %369 = vmatpush2.msra.mxu0 0.0
    %370 = vmatprep.subr.mxu0 0.0
    %371 = vmatpush2.msra.mxu0 0.0
    %372 = vmatprep.subr.mxu0 0.0
    %373 = vmatpush2.msra.mxu0 0.0
    %374 = vmatprep.mubr.f32.mxu0 0.0
    %375 = vmatmul.mubr.f32.gmra.mxu0 %v308
    %v376 = vpop.f32.mrf.mxu0
    %v377 = vadd.f32 %v306, %v376
    %v378 = vpop.f32.mrf.mxu0
    %379 = vdwg.mxu0
    %380 = vst [vmem:[#allocation3] sm:$0x1] %v377
    // Predicated region
    $region30: #{tpu_custom_call.1} parent=1 // pred_check
      _
    $region31: #{tpu_custom_call.1} parent=1 // pred_check_branch
      %382 = sbr.rel (0) target = $region33
    $region32: #{tpu_custom_call.1} parent=1 // pred_region
      %s384 = ssub.s32 16, 16
      %385 = vsyncadd [#allocation4], %s384
      %s387 = sshll.u32 [#allocation3], 4
      %s388 = int_to_ptr.vmem [resolvable:$true] %s387
      %390 = dma.vmem_to_hbm [thread:$0]  %s388, 16, %s7, [#allocation4]
    $region33: #{tpu_custom_call.1} parent=1 // pred_fallthru
      _
    // Predicated region
    $region34: #{tpu_custom_call.1} parent=1 // pred_check
      _
    $region35: #{tpu_custom_call.1} parent=1 // pred_check_branch
      %392 = sbr.rel (0) target = $region37
    $region36: #{tpu_custom_call.1} parent=1 // pred_region
      %393 = dma.done [#allocation4], 16
    $region37: #{tpu_custom_call.1} parent=1 // pred_fallthru
      _
    %394 = vsyncpa [#allocation4], 1

</llo_original>
